<compile_context>
chip_gen: v7x
topology: tpu7x:2x2x1
jax: 0.10.0
libtpu: 0.0.40
codegen_flags: <defaults>
</compile_context>

<pallas_src>
import functools

import jax
import jax.numpy as jnp
from jax.experimental import pallas as pl
from jax.experimental.pallas import tpu as pltpu

HIDDEN = 256
BN_EPS = 1e-5
_SUBLANE = 8


def _round_up(v, m):
    return (v + m - 1) // m * m


def _vmem_capacity_bytes():
    """Physical VMEM of the running generation (64 MiB fallback = v7x floor)."""
    try:
        return int(pltpu.get_tpu_info().vmem_capacity_bytes)
    except Exception:  # pragma: no cover - conservative fallback
        return 64 * 1024 * 1024


# ------------------------------ kernel helpers ------------------------------


def _mm(a, w_ref, dt):
    """MXU matmul with f32 accumulation; operands in `dt` (bf16 by default)."""
    return jnp.dot(a.astype(dt), w_ref[...], preferred_element_type=jnp.float32)


def _col_stats(h, inv_n):
    """Single-pass per-column mean / biased variance over the batch.

    NOTE: E[h^2] - mean^2 is cancellation-prone when |mean| >> std; it is fine
    at this module's activation scales (mean/std ~ O(1)).
    """
    s = jnp.sum(h, axis=0, keepdims=True)
    ss = jnp.sum(h * h, axis=0, keepdims=True)
    mean = s * inv_n
    var = jnp.maximum(ss * inv_n - mean * mean, 0.0)
    return mean, var


def _bn_fold(mean, var, gamma, beta):
    scale = gamma * jax.lax.rsqrt(var + BN_EPS)
    shift = beta - mean * scale
    return scale, shift


# --------------------- single-window kernel (small/med B) -------------------


def _mlp_single_kernel(x_ref, w1_ref, g1_ref, be1_ref, w2_ref, g2_ref, be2_ref,
                       w3_ref, b3_ref, out_ref, *, valid_b, max_delta, dt):
    x = x_ref[...]                                    # (B_pad, D) f32
    b_pad = x.shape[0]
    inv_n = 1.0 / float(valid_b)

    # fc1 -> bn1 -> relu.  fc1 bias cancels exactly under batch-stat BN, and
    # zero-padded rows give exactly-zero pre-activations -> no stats mask.
    h1p = _mm(x, w1_ref, dt)
    scale1, shift1 = _bn_fold(*_col_stats(h1p, inv_n), g1_ref[...], be1_ref[...])
    h1 = jnp.maximum(h1p * scale1 + shift1, 0.0)
    if valid_b != b_pad:
        # Zero padded rows once so layer-2 statistics need no mask either.
        rows = jax.lax.broadcasted_iota(jnp.int32, (b_pad, 1), 0)
        h1 = jnp.where(rows < valid_b, h1, 0.0)

    # fc2 -> bn2 -> relu (fc2 bias likewise cancelled).
    h2p = _mm(h1, w2_ref, dt)
    scale2, shift2 = _bn_fold(*_col_stats(h2p, inv_n), g2_ref[...], be2_ref[...])
    h2 = jnp.maximum(h2p * scale2 + shift2, 0.0)

    # fc3 -> tanh * max_delta (output stays unpadded and lane-narrow: D=16).
    out_ref[...] = jnp.tanh(_mm(h2, w3_ref, dt) + b3_ref[...]) * max_delta


# ------------------- chunked-grid kernels (large B path) --------------------


def _chunk_stats1_kernel(x_ref, w1_ref, stat_ref, *, dt):
    # Padded rows of x are zero and the fc1 bias is cancelled -> no mask.
    h = _mm(x_ref[...], w1_ref, dt)                   # (TB, H) f32
    stat_ref[0, 0:1, :] = jnp.sum(h, axis=0, keepdims=True)
    stat_ref[0, 1:2, :] = jnp.sum(h * h, axis=0, keepdims=True)


def _chunk_stats2_kernel(x_ref, w1_ref, sc1_ref, sh1_ref, w2_ref, stat_ref,
                         *, dt, tb, valid_b, mask_pad):
    h1 = jnp.maximum(_mm(x_ref[...], w1_ref, dt) * sc1_ref[...] + sh1_ref[...], 0.0)
    if mask_pad:
        rows = jax.lax.broadcasted_iota(jnp.int32, (tb, 1), 0) + pl.program_id(0) * tb
        h1 = jnp.where(rows < valid_b, h1, 0.0)       # keep padded rows out of stats
    h2 = _mm(h1, w2_ref, dt)
    stat_ref[0, 0:1, :] = jnp.sum(h2, axis=0, keepdims=True)
    stat_ref[0, 1:2, :] = jnp.sum(h2 * h2, axis=0, keepdims=True)


def _chunk_apply_kernel(x_ref, w1_ref, sc1_ref, sh1_ref, w2_ref, sc2_ref, sh2_ref,
                        w3_ref, b3_ref, out_ref, *, dt, max_delta):
    h1 = jnp.maximum(_mm(x_ref[...], w1_ref, dt) * sc1_ref[...] + sh1_ref[...], 0.0)
    h2 = jnp.maximum(_mm(h1, w2_ref, dt) * sc2_ref[...] + sh2_ref[...], 0.0)
    out_ref[...] = jnp.tanh(_mm(h2, w3_ref, dt) + b3_ref[...]) * max_delta


# --------------------------------- wrappers ---------------------------------


def prepare_params(params, matmul_dtype=jnp.bfloat16):
    """Hoisted per-call prep: drop the cancelled fc1/fc2 biases, cast matmul
    weights to the MXU-native dtype, reshape BN / fc3 params to (1, feat)."""
    (w1, b1, g1, be1, w2, b2, g2, be2, w3, b3) = params
    del b1, b2  # additive fc biases cancel exactly under batch-statistics BN
    row = lambda v: jnp.asarray(v, jnp.float32).reshape(1, -1)
    cast = lambda w: jnp.asarray(w, matmul_dtype)
    return (cast(w1), row(g1), row(be1), cast(w2), row(g2), row(be2),
            cast(w3), row(b3))


def _forward_single(x, prep, max_delta):
    B, D = x.shape
    w1, g1, be1, w2, g2, be2, w3, b3 = prep
    H = w1.shape[1]
    dt = w1.dtype
    b_pad = _round_up(max(B, 1), _SUBLANE)
    if b_pad != B:
        x = jnp.pad(x, ((0, b_pad - B), (0, 0)))

    itemsize = jnp.dtype(dt).itemsize
    weight_bytes = itemsize * (D * H + H * H + H * D)
    need = weight_bytes + 4 * (b_pad * (2 * D + 4 * H) + 4 * H + D)
    cap = _vmem_capacity_bytes()                      # per-generation budget
    vmem_limit = int(min(int(0.75 * cap), max(16 * 1024 * 1024, 2 * need)))

    vmem = pl.BlockSpec(memory_space=pltpu.MemorySpace.VMEM)
    out = pl.pallas_call(
        functools.partial(_mlp_single_kernel, valid_b=B,
                          max_delta=float(max_delta), dt=dt),
        out_shape=jax.ShapeDtypeStruct((b_pad, D), jnp.float32),
        in_specs=[vmem] * 9,
        out_specs=vmem,
        compiler_params=pltpu.CompilerParams(vmem_limit_bytes=vmem_limit),
        cost_estimate=pl.CostEstimate(
            flops=2 * b_pad * (D * H + H * H + H * D) + 10 * b_pad * H,
            transcendentals=b_pad * D + 4 * H,
            bytes_accessed=8 * b_pad * D + weight_bytes + 4 * (4 * H + D)),
    )(x, w1, g1, be1, w2, g2, be2, w3, b3)
    return out[:B] if b_pad != B else out


def _forward_chunked(x, prep, max_delta, batch_chunk):
    B, D = x.shape
    w1, g1, be1, w2, g2, be2, w3, b3 = prep
    H = w1.shape[1]
    dt = w1.dtype
    tb = _round_up(batch_chunk, _SUBLANE)
    b_pad = _round_up(B, tb)
    if b_pad != B:
        x = jnp.pad(x, ((0, b_pad - B), (0, 0)))
    nchunks = b_pad // tb
    inv_n = jnp.float32(1.0 / B)

    x_spec = pl.BlockSpec((tb, D), lambda i: (i, 0))
    out_spec = pl.BlockSpec((tb, D), lambda i: (i, 0))
    res = lambda a: pl.BlockSpec(a.shape, lambda i: (0,) * a.ndim)  # VMEM-resident
    stat_spec = pl.BlockSpec((1, 2, H), lambda i: (i, 0, 0))
    stat_shape = jax.ShapeDtypeStruct((nchunks, 2, H), jnp.float32)
    # Every pass is embarrassingly parallel over batch chunks (per-chunk
    # partial stats, no resident accumulator) -> shards over v7x's two TCs.
    cparams = pltpu.CompilerParams(dimension_semantics=("parallel",))

    def fold(stats, gamma, beta):
        mean = jnp.sum(stats[:, 0, :], axis=0, keepdims=True) * inv_n
        ex2 = jnp.sum(stats[:, 1, :], axis=0, keepdims=True) * inv_n
        var = jnp.maximum(ex2 - mean * mean, 0.0)
        return _bn_fold(mean, var, gamma, beta)

    # Pass 1: per-chunk partial bn1 statistics (fc1 only).
    st1 = pl.pallas_call(
        functools.partial(_chunk_stats1_kernel, dt=dt),
        grid=(nchunks,),
        in_specs=[x_spec, res(w1)],
        out_specs=stat_spec,
        out_shape=stat_shape,
        compiler_params=cparams,
    )(x, w1)
    sc1, sh1 = fold(st1, g1, be1)

    # Pass 2: per-chunk partial bn2 statistics (fc1 recomputed -> bn1 -> fc2).
    st2 = pl.pallas_call(
        functools.partial(_chunk_stats2_kernel, dt=dt, tb=tb, valid_b=B,
                          mask_pad=(b_pad != B)),
        grid=(nchunks,),
        in_specs=[x_spec, res(w1), res(sc1), res(sh1), res(w2)],
        out_specs=stat_spec,
        out_shape=stat_shape,
        compiler_params=cparams,
    )(x, w1, sc1, sh1, w2)
    sc2, sh2 = fold(st2, g2, be2)

    # Pass 3: full forward with folded BN, chunked (double-buffered) output.
    out = pl.pallas_call(
        functools.partial(_chunk_apply_kernel, dt=dt, max_delta=float(max_delta)),
        grid=(nchunks,),
        in_specs=[x_spec, res(w1), res(sc1), res(sh1), res(w2), res(sc2), res(sh2),
                  res(w3), res(b3)],
        out_specs=out_spec,
        out_shape=jax.ShapeDtypeStruct((b_pad, D), jnp.float32),
        compiler_params=cparams,
    )(x, w1, sc1, sh1, w2, sc2, sh2, w3, b3)
    return out[:B] if b_pad != B else out


def refinement_mlp(x, prep, *, max_delta=2.0, batch_chunk=1024,
                   single_window_rows=4096):
    """Forward pass of RefinementMLP (training-mode BatchNorm statistics).

    `prep` must come from prepare_params(); the matmul dtype is inferred from
    it (bf16 by default).  x: (B, 2*num_landmarks) or (B, num_landmarks, 2).
    """
    if x.ndim == 3:                                   # mirrors `x.view(x.size(0), -1)`
        x = x.reshape(x.shape[0], -1)
    x = x.astype(jnp.float32)
    B, D = x.shape
    H = prep[0].shape[1]
    # Single VMEM-resident window (no grid-step overhead) for small/medium
    # batches; chunked grid once activations would press on this generation's
    # VMEM (notably v7x's 64 MiB).
    row_budget = int(0.4 * _vmem_capacity_bytes()) // (4 * (2 * D + 4 * H))
    if B <= min(single_window_rows, max(row_budget, _SUBLANE)):
        return _forward_single(x, prep, max_delta)
    return _forward_chunked(x, prep, max_delta, batch_chunk)


# ------------------------- reference & parameter init -----------------------


def init_params(key, num_landmarks):
    """Deterministic synthetic parameters matching the nn.Module shapes."""
    d = num_landmarks * 2
    h = HIDDEN
    ks = jax.random.split(key, 6)
    w1 = jax.random.normal(ks[0], (d, h), jnp.float32) * 0.05
    b1 = jax.random.normal(ks[1], (1, h), jnp.float32) * 0.01
    w2 = jax.random.normal(ks[2], (h, h), jnp.float32) * 0.05
    b2 = jax.random.normal(ks[3], (1, h), jnp.float32) * 0.01
    w3 = jax.random.normal(ks[4], (h, d), jnp.float32) * 0.05
    b3 = jax.random.normal(ks[5], (1, d), jnp.float32) * 0.01
    g1 = jnp.ones((1, h), jnp.float32); be1 = jnp.zeros((1, h), jnp.float32)
    g2 = jnp.ones((1, h), jnp.float32); be2 = jnp.zeros((1, h), jnp.float32)
    return (w1, b1, g1, be1, w2, b2, g2, be2, w3, b3)


def refinement_mlp_ref(x, params, *, max_delta=2.0, matmul_dtype=jnp.float32):
    """Pure-JAX reference mirroring the PyTorch forward (training-mode BN)."""
    if x.ndim == 3:
        x = x.reshape(x.shape[0], -1)
    x = x.astype(jnp.float32)
    (w1, b1, g1, be1, w2, b2, g2, be2, w3, b3) = params

    def lin(a, w, b):
        y = jnp.dot(a.astype(matmul_dtype), w.astype(matmul_dtype),
                    preferred_element_type=jnp.float32)
        return y + b

    def bn(h, g, be):
        m = h.mean(axis=0, keepdims=True)
        v = ((h - m) ** 2).mean(axis=0, keepdims=True)
        return (h - m) * jax.lax.rsqrt(v + BN_EPS) * g + be

    h1 = jax.nn.relu(bn(lin(x, w1, b1), g1, be1))
    h2 = jax.nn.relu(bn(lin(h1, w2, b2), g2, be2))
    return jnp.tanh(lin(h2, w3, b3)) * max_delta


if __name__ == "__main__":
    num_landmarks = 8                # -> input_dim = 16
    max_delta = 2.0

    key = jax.random.PRNGKey(0)
    k_x, k_p, k_big = jax.random.split(key, 3)
    params = init_params(k_p, num_landmarks)

    prep_f32 = prepare_params(params, matmul_dtype=jnp.float32)   # exact path
    prep_bf16 = prepare_params(params)                            # default bf16

    # Case 1: small batch, 3-D input (exercises reshape), f32 exactness.
    x8 = jax.random.uniform(k_x, (8, num_landmarks, 2), jnp.float32) * 16.0
    out8 = jax.block_until_ready(refinement_mlp(x8, prep_f32, max_delta=max_delta))
    ref8 = refinement_mlp_ref(x8, params, max_delta=max_delta)
    assert out8.shape == (8, num_landmarks * 2)
    assert jnp.allclose(out8, ref8, atol=2e-4, rtol=2e-4)

    # Case 2: ragged batch (exercises sublane padding + single padded-row zeroing).
    x5 = x8.reshape(8, -1)[:5]
    out5 = jax.block_until_ready(refinement_mlp(x5, prep_f32, max_delta=max_delta))
    ref5 = refinement_mlp_ref(x5, params, max_delta=max_delta)
    assert out5.shape == (5, num_landmarks * 2)
    assert jnp.allclose(out5, ref5, atol=2e-4, rtol=2e-4)

    # Case 3: default bf16 matmul operands (MXU-native) vs a bf16-operand reference.
    out8b = jax.block_until_ready(refinement_mlp(x8, prep_bf16, max_delta=max_delta))
    ref8b = refinement_mlp_ref(x8, params, max_delta=max_delta,
                               matmul_dtype=jnp.bfloat16)
    assert jnp.allclose(out8b, ref8b, atol=2e-3, rtol=2e-3)

    # Case 4: chunked-grid path (resident weights, two-phase BN, "parallel"
    # batch axis), batch not a multiple of the chunk size.
    xb = jax.random.uniform(k_big, (1000, num_landmarks * 2), jnp.float32) * 16.0
    outb = jax.block_until_ready(
        refinement_mlp(xb, prep_f32, max_delta=max_delta,
                       batch_chunk=256, single_window_rows=512))
    refb = refinement_mlp_ref(xb, params, max_delta=max_delta)
    assert outb.shape == (1000, num_landmarks * 2)
    assert jnp.allclose(outb, refb, atol=5e-4, rtol=5e-4)

    print("KERNEL_OK")
</pallas_src>

<mosaic_0001>
module attributes {stable_mosaic.version = 11 : i64} {
  func.func @_mlp_single_kernel(%arg0: memref<8x16xf32, #tpu.memory_space<vmem>>, %arg1: memref<16x256xf32, #tpu.memory_space<vmem>>, %arg2: memref<1x256xf32, #tpu.memory_space<vmem>>, %arg3: memref<1x256xf32, #tpu.memory_space<vmem>>, %arg4: memref<256x256xf32, #tpu.memory_space<vmem>>, %arg5: memref<1x256xf32, #tpu.memory_space<vmem>>, %arg6: memref<1x256xf32, #tpu.memory_space<vmem>>, %arg7: memref<256x16xf32, #tpu.memory_space<vmem>>, %arg8: memref<1x16xf32, #tpu.memory_space<vmem>>, %arg9: memref<8x16xf32, #tpu.memory_space<vmem>>) attributes {dimension_semantics = [], scalar_prefetch = 0 : i64, scratch_operands = 0 : i64, tpu.core_type = #tpu.core_type<tc>} {
    %c0 = arith.constant 0 : index
    %c0_0 = arith.constant 0 : index
    %0 = vector.load %arg0[%c0, %c0_0] : memref<8x16xf32, #tpu.memory_space<vmem>>, vector<8x16xf32>
    %c0_1 = arith.constant 0 : index
    %c0_2 = arith.constant 0 : index
    %1 = vector.load %arg1[%c0_1, %c0_2] : memref<16x256xf32, #tpu.memory_space<vmem>>, vector<16x256xf32>
    %cst = arith.constant dense<0.000000e+00> : vector<8x256xf32>
    %2 = tpu.matmul %0, %1, %cst {dimension_numbers = #tpu.dot_dimension_numbers<[1], [0], [0], [1], [0, 0, 1, 1], [], []>} : vector<8x16xf32>, vector<16x256xf32>, vector<8x256xf32> -> vector<8x256xf32>
    %cst_3 = arith.constant dense<0.000000e+00> : vector<256xf32>
    %3 = vector.multi_reduction <add>, %2, %cst_3 [0] : vector<8x256xf32> to vector<256xf32>
    %4 = vector.shape_cast %3 : vector<256xf32> to vector<1x256xf32>
    %5 = arith.mulf %2, %2 : vector<8x256xf32>
    %cst_4 = arith.constant dense<0.000000e+00> : vector<256xf32>
    %6 = vector.multi_reduction <add>, %5, %cst_4 [0] : vector<8x256xf32> to vector<256xf32>
    %7 = vector.shape_cast %6 : vector<256xf32> to vector<1x256xf32>
    %cst_5 = arith.constant 1.250000e-01 : f32
    %8 = vector.broadcast %cst_5 : f32 to vector<1x256xf32>
    %9 = arith.mulf %4, %8 : vector<1x256xf32>
    %cst_6 = arith.constant 1.250000e-01 : f32
    %10 = vector.broadcast %cst_6 : f32 to vector<1x256xf32>
    %11 = arith.mulf %7, %10 : vector<1x256xf32>
    %12 = arith.mulf %9, %9 : vector<1x256xf32>
    %13 = arith.subf %11, %12 : vector<1x256xf32>
    %cst_7 = arith.constant 0.000000e+00 : f32
    %14 = vector.broadcast %cst_7 : f32 to vector<1x256xf32>
    %15 = arith.maximumf %13, %14 : vector<1x256xf32>
    %c0_8 = arith.constant 0 : index
    %c0_9 = arith.constant 0 : index
    %16 = vector.load %arg2[%c0_8, %c0_9] : memref<1x256xf32, #tpu.memory_space<vmem>>, vector<1x256xf32>
    %c0_10 = arith.constant 0 : index
    %c0_11 = arith.constant 0 : index
    %17 = vector.load %arg3[%c0_10, %c0_11] : memref<1x256xf32, #tpu.memory_space<vmem>>, vector<1x256xf32>
    %cst_12 = arith.constant 9.99999974E-6 : f32
    %18 = vector.broadcast %cst_12 : f32 to vector<1x256xf32>
    %19 = arith.addf %15, %18 : vector<1x256xf32>
    %20 = math.rsqrt %19 : vector<1x256xf32>
    %21 = arith.mulf %16, %20 : vector<1x256xf32>
    %22 = arith.mulf %9, %21 : vector<1x256xf32>
    %23 = arith.subf %17, %22 : vector<1x256xf32>
    %24 = vector.broadcast %21 : vector<1x256xf32> to vector<8x256xf32>
    %25 = arith.mulf %2, %24 : vector<8x256xf32>
    %26 = vector.broadcast %23 : vector<1x256xf32> to vector<8x256xf32>
    %27 = arith.addf %25, %26 : vector<8x256xf32>
    %cst_13 = arith.constant 0.000000e+00 : f32
    %28 = vector.broadcast %cst_13 : f32 to vector<8x256xf32>
    %29 = arith.maximumf %27, %28 : vector<8x256xf32>
    %c0_14 = arith.constant 0 : index
    %c0_15 = arith.constant 0 : index
    %30 = vector.load %arg4[%c0_14, %c0_15] : memref<256x256xf32, #tpu.memory_space<vmem>>, vector<256x256xf32>
    %cst_16 = arith.constant dense<0.000000e+00> : vector<8x256xf32>
    %31 = tpu.matmul %29, %30, %cst_16 {dimension_numbers = #tpu.dot_dimension_numbers<[1], [0], [0], [1], [0, 0, 1, 1], [], []>} : vector<8x256xf32>, vector<256x256xf32>, vector<8x256xf32> -> vector<8x256xf32>
    %cst_17 = arith.constant dense<0.000000e+00> : vector<256xf32>
    %32 = vector.multi_reduction <add>, %31, %cst_17 [0] : vector<8x256xf32> to vector<256xf32>
    %33 = vector.shape_cast %32 : vector<256xf32> to vector<1x256xf32>
    %34 = arith.mulf %31, %31 : vector<8x256xf32>
    %cst_18 = arith.constant dense<0.000000e+00> : vector<256xf32>
    %35 = vector.multi_reduction <add>, %34, %cst_18 [0] : vector<8x256xf32> to vector<256xf32>
    %36 = vector.shape_cast %35 : vector<256xf32> to vector<1x256xf32>
    %cst_19 = arith.constant 1.250000e-01 : f32
    %37 = vector.broadcast %cst_19 : f32 to vector<1x256xf32>
    %38 = arith.mulf %33, %37 : vector<1x256xf32>
    %cst_20 = arith.constant 1.250000e-01 : f32
    %39 = vector.broadcast %cst_20 : f32 to vector<1x256xf32>
    %40 = arith.mulf %36, %39 : vector<1x256xf32>
    %41 = arith.mulf %38, %38 : vector<1x256xf32>
    %42 = arith.subf %40, %41 : vector<1x256xf32>
    %cst_21 = arith.constant 0.000000e+00 : f32
    %43 = vector.broadcast %cst_21 : f32 to vector<1x256xf32>
    %44 = arith.maximumf %42, %43 : vector<1x256xf32>
    %c0_22 = arith.constant 0 : index
    %c0_23 = arith.constant 0 : index
    %45 = vector.load %arg5[%c0_22, %c0_23] : memref<1x256xf32, #tpu.memory_space<vmem>>, vector<1x256xf32>
    %c0_24 = arith.constant 0 : index
    %c0_25 = arith.constant 0 : index
    %46 = vector.load %arg6[%c0_24, %c0_25] : memref<1x256xf32, #tpu.memory_space<vmem>>, vector<1x256xf32>
    %cst_26 = arith.constant 9.99999974E-6 : f32
    %47 = vector.broadcast %cst_26 : f32 to vector<1x256xf32>
    %48 = arith.addf %44, %47 : vector<1x256xf32>
    %49 = math.rsqrt %48 : vector<1x256xf32>
    %50 = arith.mulf %45, %49 : vector<1x256xf32>
    %51 = arith.mulf %38, %50 : vector<1x256xf32>
    %52 = arith.subf %46, %51 : vector<1x256xf32>
    %53 = vector.broadcast %50 : vector<1x256xf32> to vector<8x256xf32>
    %54 = arith.mulf %31, %53 : vector<8x256xf32>
    %55 = vector.broadcast %52 : vector<1x256xf32> to vector<8x256xf32>
    %56 = arith.addf %54, %55 : vector<8x256xf32>
    %cst_27 = arith.constant 0.000000e+00 : f32
    %57 = vector.broadcast %cst_27 : f32 to vector<8x256xf32>
    %58 = arith.maximumf %56, %57 : vector<8x256xf32>
    %c0_28 = arith.constant 0 : index
    %c0_29 = arith.constant 0 : index
    %59 = vector.load %arg7[%c0_28, %c0_29] : memref<256x16xf32, #tpu.memory_space<vmem>>, vector<256x16xf32>
    %cst_30 = arith.constant dense<0.000000e+00> : vector<8x16xf32>
    %60 = tpu.matmul %58, %59, %cst_30 {dimension_numbers = #tpu.dot_dimension_numbers<[1], [0], [0], [1], [0, 0, 1, 1], [], []>} : vector<8x256xf32>, vector<256x16xf32>, vector<8x16xf32> -> vector<8x16xf32>
    %c0_31 = arith.constant 0 : index
    %c0_32 = arith.constant 0 : index
    %61 = vector.load %arg8[%c0_31, %c0_32] : memref<1x16xf32, #tpu.memory_space<vmem>>, vector<1x16xf32>
    %62 = vector.broadcast %61 : vector<1x16xf32> to vector<8x16xf32>
    %63 = arith.addf %60, %62 : vector<8x16xf32>
    %64 = math.tanh %63 : vector<8x16xf32>
    %cst_33 = arith.constant 2.000000e+00 : f32
    %65 = vector.broadcast %cst_33 : f32 to vector<8x16xf32>
    %66 = arith.mulf %64, %65 : vector<8x16xf32>
    %c0_34 = arith.constant 0 : index
    %c0_35 = arith.constant 0 : index
    %67 = vector.load %arg9[%c0_34, %c0_35] : memref<8x16xf32, #tpu.memory_space<vmem>>, vector<8x16xf32>
    tpu.vector_store %arg9[%c0_34, %c0_35], %66 {strides = array<i32>} : memref<8x16xf32, #tpu.memory_space<vmem>>, vector<8x16xf32>,
    return
  }
}

</mosaic_0001>

<llo_original>
// kernel: tpu_custom_call.1
$region0: #{tpu_custom_call.1}
  #allocation0 [shape = 'u32[]', space=smem, size = 0x4, offset = 0x4, fixed_abs, tag = 'smem constant byte address 0x4 - core index']
  #allocation1 [shape = 'u32[144,128]{1,0:T(1,128)}', space=vmem, size = 0x12000, scoped, tag = 'internal scratch']
  %s0 = inlined_call_operand.vmem [shape: f32[8,16], index: 0, kind: input, shape index: {}]
  %s1 = inlined_call_operand.vmem [shape: f32[16,256], index: 1, kind: input, shape index: {}]
  %s2 = inlined_call_operand.vmem [shape: f32[1,256], index: 2, kind: input, shape index: {}]
  %s3 = inlined_call_operand.vmem [shape: f32[1,256], index: 3, kind: input, shape index: {}]
  %s4 = inlined_call_operand.hbm [shape: f32[256,256], index: 4, kind: input, shape index: {}]
  %s5 = inlined_call_operand.vmem [shape: f32[1,256], index: 5, kind: input, shape index: {}]
  %s6 = inlined_call_operand.vmem [shape: f32[1,256], index: 6, kind: input, shape index: {}]
  %s7 = inlined_call_operand.vmem [shape: f32[256,16], index: 7, kind: input, shape index: {}]
  %s8 = inlined_call_operand.vmem [shape: f32[1,16], index: 8, kind: input, shape index: {}]
  %s9 = inlined_call_operand.hbm [shape: f32[8,16], index: 9, kind: output, shape index: {}]
  %s10 = sld [smem:[#allocation0]]
  $region50: #{tpu_custom_call.1} parent=0
    _
  %s12 = ssub.s32 1, %s10
  %s13 = scalar_select 0, %s12, %s10
  $region1: #{tpu_custom_call.1} parent=0
    #allocation2 [shape = 'u8[262144]{0}', space=vmem, size = 0x40000, scoped, tag = 'input window, operand 4, single buffered']
    #allocation3 [shape = 's32[1]{0}', space=sflag, size = 0x4, scoped, tag = 'scoped memory for tpu_custom_call.1']
    #allocation4 [shape = 's32[1]{0}', space=sflag, size = 0x4, scoped, tag = 'scoped memory for tpu_custom_call.1']
    #allocation5 [shape = 'u8[4096]{0}', space=vmem, size = 0x1000, scoped, tag = 'output window, operand 0, single buffered']
    %14 = vsyncpa [#allocation3], 0
    %15 = vsyncpa [#allocation4], 0
    // Predicated region
    $region2: #{tpu_custom_call.1} parent=1 // pred_check
      _
    $region3: #{tpu_custom_call.1} parent=1 // pred_check_branch
      %17 = sbr.rel (0) target = $region5
    $region4: #{tpu_custom_call.1} parent=1 // pred_region
      _
    $region5: #{tpu_custom_call.1} parent=1 // pred_fallthru
      _
    // Predicated region
    $region6: #{tpu_custom_call.1} parent=1 // pred_check
      _
    $region7: #{tpu_custom_call.1} parent=1 // pred_check_branch
      %19 = sbr.rel (0) target = $region9
    $region8: #{tpu_custom_call.1} parent=1 // pred_region
      _
    $region9: #{tpu_custom_call.1} parent=1 // pred_fallthru
      _
    // Predicated region
    $region10: #{tpu_custom_call.1} parent=1 // pred_check
      _
    $region11: #{tpu_custom_call.1} parent=1 // pred_check_branch
      %21 = sbr.rel (0) target = $region13
    $region12: #{tpu_custom_call.1} parent=1 // pred_region
      _
    $region13: #{tpu_custom_call.1} parent=1 // pred_fallthru
      _
    // Predicated region
    $region14: #{tpu_custom_call.1} parent=1 // pred_check
      _
    $region15: #{tpu_custom_call.1} parent=1 // pred_check_branch
      %23 = sbr.rel (0) target = $region17
    $region16: #{tpu_custom_call.1} parent=1 // pred_region
      _
    $region17: #{tpu_custom_call.1} parent=1 // pred_fallthru
      _
    // Predicated region
    $region18: #{tpu_custom_call.1} parent=1 // pred_check
      _
    $region19: #{tpu_custom_call.1} parent=1 // pred_check_branch
      %25 = sbr.rel (0) target = $region21
    $region20: #{tpu_custom_call.1} parent=1 // pred_region
      %s27 = ssub.s32 8192, 8192
      %28 = vsyncadd [#allocation3], %s27
      %s29 = sshll.u32 [#allocation2], 4
      %s30 = int_to_ptr.vmem [resolvable:$true] %s29
      %35 = dma.hbm_to_vmem [thread:$0]  %s4, 8192, %s30, [#allocation3], 256, 256, 16
    $region21: #{tpu_custom_call.1} parent=1 // pred_fallthru
      _
    // Predicated region
    $region22: #{tpu_custom_call.1} parent=1 // pred_check
      _
    $region23: #{tpu_custom_call.1} parent=1 // pred_check_branch
      %37 = sbr.rel (0) target = $region25
    $region24: #{tpu_custom_call.1} parent=1 // pred_region
      _
    $region25: #{tpu_custom_call.1} parent=1 // pred_fallthru
      _
    // Predicated region
    $region26: #{tpu_custom_call.1} parent=1 // pred_check
      _
    $region27: #{tpu_custom_call.1} parent=1 // pred_check_branch
      %39 = sbr.rel (0) target = $region29
    $region28: #{tpu_custom_call.1} parent=1 // pred_region
      _
    $region29: #{tpu_custom_call.1} parent=1 // pred_fallthru
      _
    // Predicated region
    $region30: #{tpu_custom_call.1} parent=1 // pred_check
      _
    $region31: #{tpu_custom_call.1} parent=1 // pred_check_branch
      %41 = sbr.rel (0) target = $region33
    $region32: #{tpu_custom_call.1} parent=1 // pred_region
      _
    $region33: #{tpu_custom_call.1} parent=1 // pred_fallthru
      _
    // Predicated region
    $region34: #{tpu_custom_call.1} parent=1 // pred_check
      _
    $region35: #{tpu_custom_call.1} parent=1 // pred_check_branch
      %43 = sbr.rel (0) target = $region37
    $region36: #{tpu_custom_call.1} parent=1 // pred_region
      _
    $region37: #{tpu_custom_call.1} parent=1 // pred_fallthru
      _
    // Predicated region
    $region38: #{tpu_custom_call.1} parent=1 // pred_check
      _
    $region39: #{tpu_custom_call.1} parent=1 // pred_check_branch
      %45 = sbr.rel (0) target = $region41
    $region40: #{tpu_custom_call.1} parent=1 // pred_region
      %46 = dma.done [#allocation3], 8192
    $region41: #{tpu_custom_call.1} parent=1 // pred_fallthru
      _
    %v47 = vld [vmem:[%s0] sm:$0xff]
    %v48 = vld [vmem:[%s1] sm:$0xff]
    %v49 = vld [vmem:[%s1 + $0x8] sm:$0xff]
    %v50 = vld [vmem:[%s1 + $0x10] sm:$0xff]
    %v51 = vld [vmem:[%s1 + $0x18] sm:$0xff]
    %vm52 = vcmask 130048
    %v54 = vsel %vm52, %v47, 0
    %56 = vmatprep.subr.mxu0 %v49
    %57 = vmatpush1.msra.mxu0 %v48
    %58 = vmatprep.subr.mxu0 %v51
    %59 = vmatpush1.msra.mxu0 %v50
    %60 = vmatprep.subr.mxu0 0.0
    %61 = vmatpush1.msra.mxu0 0.0
    %62 = vmatprep.subr.mxu0 0.0
    %63 = vmatpush1.msra.mxu0 0.0
    %64 = vmatprep.subr.mxu0 0.0
    %65 = vmatpush1.msra.mxu0 0.0
    %66 = vmatprep.subr.mxu0 0.0
    %67 = vmatpush1.msra.mxu0 0.0
    %68 = vmatprep.subr.mxu0 0.0
    %69 = vmatpush1.msra.mxu0 0.0
    %70 = vmatprep.subr.mxu0 0.0
    %71 = vmatpush1.msra.mxu0 0.0
    %72 = vmatprep.subr.mxu0 0.0
    %73 = vmatpush1.msra.mxu0 0.0
    %74 = vmatprep.subr.mxu0 0.0
    %75 = vmatpush1.msra.mxu0 0.0
    %76 = vmatprep.subr.mxu0 0.0
    %77 = vmatpush1.msra.mxu0 0.0
    %78 = vmatprep.subr.mxu0 0.0
    %79 = vmatpush1.msra.mxu0 0.0
    %80 = vmatprep.subr.mxu0 0.0
    %81 = vmatpush1.msra.mxu0 0.0
    %82 = vmatprep.subr.mxu0 0.0
    %83 = vmatpush1.msra.mxu0 0.0
    %84 = vmatprep.subr.mxu0 0.0
    %85 = vmatpush1.msra.mxu0 0.0
    %86 = vmatprep.subr.mxu0 0.0
    %87 = vmatpush1.msra.mxu0 0.0
    %88 = vmatprep.subr.mxu0 0.0
    %89 = vmatpush1.msra.mxu0 0.0
    %90 = vmatprep.subr.mxu0 0.0
    %91 = vmatpush1.msra.mxu0 0.0
    %92 = vmatprep.subr.mxu0 0.0
    %93 = vmatpush1.msra.mxu0 0.0
    %94 = vmatprep.subr.mxu0 0.0
    %95 = vmatpush1.msra.mxu0 0.0
    %96 = vmatprep.subr.mxu0 0.0
    %97 = vmatpush1.msra.mxu0 0.0
    %98 = vmatprep.subr.mxu0 0.0
    %99 = vmatpush1.msra.mxu0 0.0
    %100 = vmatprep.subr.mxu0 0.0
    %101 = vmatpush1.msra.mxu0 0.0
    %102 = vmatprep.subr.mxu0 0.0
    %103 = vmatpush1.msra.mxu0 0.0
    %104 = vmatprep.subr.mxu0 0.0
    %105 = vmatpush1.msra.mxu0 0.0
    %106 = vmatprep.subr.mxu0 0.0
    %107 = vmatpush1.msra.mxu0 0.0
    %108 = vmatprep.subr.mxu0 0.0
    %109 = vmatpush1.msra.mxu0 0.0
    %110 = vmatprep.subr.mxu0 0.0
    %111 = vmatpush1.msra.mxu0 0.0
    %112 = vmatprep.subr.mxu0 0.0
    %113 = vmatpush1.msra.mxu0 0.0
    %114 = vmatprep.subr.mxu0 0.0
    %115 = vmatpush1.msra.mxu0 0.0
    %116 = vmatprep.subr.mxu0 0.0
    %117 = vmatpush1.msra.mxu0 0.0
    %118 = vmatprep.subr.mxu0 0.0
    %119 = vmatpush1.msra.mxu0 0.0
    %120 = vmatprep.mubr.f32.mxu0 0.0
    %121 = vmatmul.mubr.f32.gmra.mrb[0].mxu0 %v54
    %v122 = vpop.f32.mrb[0].mxu0
    %v123 = vadd.f32 0.0, %v122
    %v124 = vpop.f32.mrb[0].mxu0
    %v125 = vadd.f32 0.0, %v124
    %126 = vdwg.mxu0
    %v127 = vrot.slane %v123, 4
    %v128 = vadd.f32 %v123, %v127
    %v129 = vrot.slane %v128, 2
    %v130 = vadd.f32 %v128, %v129
    %v131 = vrot.slane %v130, 1
    %v132 = vadd.f32 %v130, %v131
    %v133 = vrot.slane %v125, 4
    %v134 = vadd.f32 %v125, %v133
    %v135 = vrot.slane %v134, 2
    %v136 = vadd.f32 %v134, %v135
    %v137 = vrot.slane %v136, 1
    %v138 = vadd.f32 %v136, %v137
    %v139 = vmul.f32 %v123, %v123
    %v140 = vmul.f32 %v125, %v125
    %v141 = vrot.slane %v139, 4
    %v142 = vadd.f32 %v139, %v141
    %v143 = vrot.slane %v142, 2
    %v144 = vadd.f32 %v142, %v143
    %v145 = vrot.slane %v144, 1
    %v146 = vadd.f32 %v144, %v145
    %v147 = vrot.slane %v140, 4
    %v148 = vadd.f32 %v140, %v147
    %v149 = vrot.slane %v148, 2
    %v150 = vadd.f32 %v148, %v149
    %v151 = vrot.slane %v150, 1
    %v152 = vadd.f32 %v150, %v151
    %v153 = vmul.f32 %v132, 0.125
    %v154 = vmul.f32 %v138, 0.125
    %v155 = vmul.f32 %v146, 0.125
    %v156 = vmul.f32 %v152, 0.125
    %v157 = vmul.f32 %v153, %v153
    %v158 = vmul.f32 %v154, %v154
    %v159 = vsub.f32 %v155, %v157
    %v160 = vsub.f32 %v156, %v158
    %v161 = vmax.f32 %v159, 0.0
    %v162 = vmax.f32 %v160, 0.0
    %v163 = vld [vmem:[%s2] sm:$0x3]
    %v164 = vld [vmem:[%s3] sm:$0x3]
    %v165 = vadd.f32 %v161, 1e-05
    %v166 = vadd.f32 %v162, 1e-05
    %v167 = vrsqrt.pop %v165
    %v168 = vrsqrt.pop %v166
    %v171 = vcombine.low %v167, %v168
    %v173 = vunpack.c.l.s4 1966171168
    %v174 = vunpack.c.0.s8 %v173
    %v175 = vlaneseq
    %v176 = vshrl.u32 %v175, 7
    %v177 = vsub.s32 %v174, %v176
    %v178 = vrot.slane %v171, %v177
    %v180 = vunpack.c.l.s4 1966171168
    %v181 = vunpack.c.0.s8 %v180
    %v182 = vlaneseq
    %v183 = vshrl.u32 %v182, 7
    %v184 = vsub.s32 %v181, %v183
    %v185 = vrot.slane %v178, %v184
    %v187 = vmul.f32 %v163, %v185
    %v189 = vlaneseq
    %v190 = vshrl.u32 %v189, 7
    %v191 = vsub.s32 0, %v190
    %v192 = vrot.slane %v187, %v191
    %v193 = vlaneseq
    %v194 = vshrl.u32 %v193, 7
    %v195 = vsub.s32 1, %v194
    %v196 = vrot.slane %v187, %v195
    %v199 = vmul.f32 %v153, %v192
    %v200 = vmul.f32 %v154, %v196
    %v203 = vcombine.low %v199, %v200
    %v205 = vunpack.c.l.s4 1966171168
    %v206 = vunpack.c.0.s8 %v205
    %v207 = vlaneseq
    %v208 = vshrl.u32 %v207, 7
    %v209 = vsub.s32 %v206, %v208
    %v210 = vrot.slane %v203, %v209
    %v212 = vunpack.c.l.s4 1966171168
    %v213 = vunpack.c.0.s8 %v212
    %v214 = vlaneseq
    %v215 = vshrl.u32 %v214, 7
    %v216 = vsub.s32 %v213, %v215
    %v217 = vrot.slane %v210, %v216
    %v219 = vsub.f32 %v164, %v217
    %v220 = vmul.f32 %v123, %v192
    %v221 = vmul.f32 %v125, %v196
    %v223 = vlaneseq
    %v224 = vshrl.u32 %v223, 7
    %v225 = vsub.s32 0, %v224
    %v226 = vrot.slane %v219, %v225
    %v227 = vlaneseq
    %v228 = vshrl.u32 %v227, 7
    %v229 = vsub.s32 1, %v228
    %v230 = vrot.slane %v219, %v229
    %v233 = vadd.f32 %v220, %v226
    %v234 = vadd.f32 %v221, %v230
    %v235 = vmax.f32 %v233, 0.0
    %v236 = vmax.f32 %v234, 0.0
    %v237 = vld [vmem:[#allocation2] sm:$0xff]
    %v238 = vld [vmem:[#allocation2 + $0x8] sm:$0xff]
    %v239 = vld [vmem:[#allocation2 + $0x10] sm:$0xff]
    %v240 = vld [vmem:[#allocation2 + $0x18] sm:$0xff]
    %v241 = vld [vmem:[#allocation2 + $0x20] sm:$0xff]
    %v242 = vld [vmem:[#allocation2 + $0x28] sm:$0xff]
    %v243 = vld [vmem:[#allocation2 + $0x30] sm:$0xff]
    %v244 = vld [vmem:[#allocation2 + $0x38] sm:$0xff]
    %v245 = vld [vmem:[#allocation2 + $0x40] sm:$0xff]
    %v246 = vld [vmem:[#allocation2 + $0x48] sm:$0xff]
    %v247 = vld [vmem:[#allocation2 + $0x50] sm:$0xff]
    %v248 = vld [vmem:[#allocation2 + $0x58] sm:$0xff]
    %v249 = vld [vmem:[#allocation2 + $0x60] sm:$0xff]
    %v250 = vld [vmem:[#allocation2 + $0x68] sm:$0xff]
    %v251 = vld [vmem:[#allocation2 + $0x70] sm:$0xff]
    %v252 = vld [vmem:[#allocation2 + $0x78] sm:$0xff]
    %v253 = vld [vmem:[#allocation2 + $0x80] sm:$0xff]
    %v254 = vld [vmem:[#allocation2 + $0x88] sm:$0xff]
    %v255 = vld [vmem:[#allocation2 + $0x90] sm:$0xff]
    %v256 = vld [vmem:[#allocation2 + $0x98] sm:$0xff]
    %v257 = vld [vmem:[#allocation2 + $0xa0] sm:$0xff]
    %v258 = vld [vmem:[#allocation2 + $0xa8] sm:$0xff]
    %v259 = vld [vmem:[#allocation2 + $0xb0] sm:$0xff]
    %v260 = vld [vmem:[#allocation2 + $0xb8] sm:$0xff]
    %v261 = vld [vmem:[#allocation2 + $0xc0] sm:$0xff]
    %v262 = vld [vmem:[#allocation2 + $0xc8] sm:$0xff]
    %v263 = vld [vmem:[#allocation2 + $0xd0] sm:$0xff]
    %v264 = vld [vmem:[#allocation2 + $0xd8] sm:$0xff]
    %v265 = vld [vmem:[#allocation2 + $0xe0] sm:$0xff]
    %v266 = vld [vmem:[#allocation2 + $0xe8] sm:$0xff]
    %v267 = vld [vmem:[#allocation2 + $0xf0] sm:$0xff]
    %v268 = vld [vmem:[#allocation2 + $0xf8] sm:$0xff]
    %v269 = vld [vmem:[#allocation2 + $0x100] sm:$0xff]
    %v270 = vld [vmem:[#allocation2 + $0x108] sm:$0xff]
    %v271 = vld [vmem:[#allocation2 + $0x110] sm:$0xff]
    %v272 = vld [vmem:[#allocation2 + $0x118] sm:$0xff]
    %v273 = vld [vmem:[#allocation2 + $0x120] sm:$0xff]
    %v274 = vld [vmem:[#allocation2 + $0x128] sm:$0xff]
    %v275 = vld [vmem:[#allocation2 + $0x130] sm:$0xff]
    %v276 = vld [vmem:[#allocation2 + $0x138] sm:$0xff]
    %v277 = vld [vmem:[#allocation2 + $0x140] sm:$0xff]
    %v278 = vld [vmem:[#allocation2 + $0x148] sm:$0xff]
    %v279 = vld [vmem:[#allocation2 + $0x150] sm:$0xff]
    %v280 = vld [vmem:[#allocation2 + $0x158] sm:$0xff]
    %v281 = vld [vmem:[#allocation2 + $0x160] sm:$0xff]
    %v282 = vld [vmem:[#allocation2 + $0x168] sm:$0xff]
    %v283 = vld [vmem:[#allocation2 + $0x170] sm:$0xff]
    %v284 = vld [vmem:[#allocation2 + $0x178] sm:$0xff]
    %v285 = vld [vmem:[#allocation2 + $0x180] sm:$0xff]
    %v286 = vld [vmem:[#allocation2 + $0x188] sm:$0xff]
    %v287 = vld [vmem:[#allocation2 + $0x190] sm:$0xff]
    %v288 = vld [vmem:[#allocation2 + $0x198] sm:$0xff]
    %v289 = vld [vmem:[#allocation2 + $0x1a0] sm:$0xff]
    %v290 = vld [vmem:[#allocation2 + $0x1a8] sm:$0xff]
    %v291 = vld [vmem:[#allocation2 + $0x1b0] sm:$0xff]
    %v292 = vld [vmem:[#allocation2 + $0x1b8] sm:$0xff]
    %v293 = vld [vmem:[#allocation2 + $0x1c0] sm:$0xff]
    %v294 = vld [vmem:[#allocation2 + $0x1c8] sm:$0xff]
    %v295 = vld [vmem:[#allocation2 + $0x1d0] sm:$0xff]
    %v296 = vld [vmem:[#allocation2 + $0x1d8] sm:$0xff]
    %v297 = vld [vmem:[#allocation2 + $0x1e0] sm:$0xff]
    %v298 = vld [vmem:[#allocation2 + $0x1e8] sm:$0xff]
    %v299 = vld [vmem:[#allocation2 + $0x1f0] sm:$0xff]
    %v300 = vld [vmem:[#allocation2 + $0x1f8] sm:$0xff]
    %301 = vmatprep.subr.mxu0 %v238
    %302 = vmatpush1.msra.mxu0 %v237
    %303 = vmatprep.subr.mxu0 %v240
    %304 = vmatpush1.msra.mxu0 %v239
    %305 = vmatprep.subr.mxu0 %v242
    %306 = vmatpush1.msra.mxu0 %v241
    %307 = vmatprep.subr.mxu0 %v244
    %308 = vmatpush1.msra.mxu0 %v243
    %309 = vmatprep.subr.mxu0 %v246
    %310 = vmatpush1.msra.mxu0 %v245
    %311 = vmatprep.subr.mxu0 %v248
    %312 = vmatpush1.msra.mxu0 %v247
    %313 = vmatprep.subr.mxu0 %v250
    %314 = vmatpush1.msra.mxu0 %v249
    %315 = vmatprep.subr.mxu0 %v252
    %316 = vmatpush1.msra.mxu0 %v251
    %317 = vmatprep.subr.mxu0 %v254
    %318 = vmatpush1.msra.mxu0 %v253
    %319 = vmatprep.subr.mxu0 %v256
    %320 = vmatpush1.msra.mxu0 %v255
    %321 = vmatprep.subr.mxu0 %v258
    %322 = vmatpush1.msra.mxu0 %v257
    %323 = vmatprep.subr.mxu0 %v260
    %324 = vmatpush1.msra.mxu0 %v259
    %325 = vmatprep.subr.mxu0 %v262
    %326 = vmatpush1.msra.mxu0 %v261
    %327 = vmatprep.subr.mxu0 %v264
    %328 = vmatpush1.msra.mxu0 %v263
    %329 = vmatprep.subr.mxu0 %v266
    %330 = vmatpush1.msra.mxu0 %v265
    %331 = vmatprep.subr.mxu0 %v268
    %332 = vmatpush1.msra.mxu0 %v267
    %333 = vmatprep.subr.mxu0 %v270
    %334 = vmatpush1.msra.mxu0 %v269
    %335 = vmatprep.subr.mxu0 %v272
    %336 = vmatpush1.msra.mxu0 %v271
    %337 = vmatprep.subr.mxu0 %v274
    %338 = vmatpush1.msra.mxu0 %v273
    %339 = vmatprep.subr.mxu0 %v276
    %340 = vmatpush1.msra.mxu0 %v275
    %341 = vmatprep.subr.mxu0 %v278
    %342 = vmatpush1.msra.mxu0 %v277
    %343 = vmatprep.subr.mxu0 %v280
    %344 = vmatpush1.msra.mxu0 %v279
    %345 = vmatprep.subr.mxu0 %v282
    %346 = vmatpush1.msra.mxu0 %v281
    %347 = vmatprep.subr.mxu0 %v284
    %348 = vmatpush1.msra.mxu0 %v283
    %349 = vmatprep.subr.mxu0 %v286
    %350 = vmatpush1.msra.mxu0 %v285
    %351 = vmatprep.subr.mxu0 %v288
    %352 = vmatpush1.msra.mxu0 %v287
    %353 = vmatprep.subr.mxu0 %v290
    %354 = vmatpush1.msra.mxu0 %v289
    %355 = vmatprep.subr.mxu0 %v292
    %356 = vmatpush1.msra.mxu0 %v291
    %357 = vmatprep.subr.mxu0 %v294
    %358 = vmatpush1.msra.mxu0 %v293
    %359 = vmatprep.subr.mxu0 %v296
    %360 = vmatpush1.msra.mxu0 %v295
    %361 = vmatprep.subr.mxu0 %v298
    %362 = vmatpush1.msra.mxu0 %v297
    %363 = vmatprep.subr.mxu0 %v300
    %364 = vmatpush1.msra.mxu0 %v299
    %365 = vmatprep.mubr.f32.mxu0 %v236
    %366 = vmatmul.mubr.f32.gmra.mrb[0].mxu0 %v235
    %v367 = vpop.f32.mrb[0].mxu0
    %v368 = vadd.f32 0.0, %v367
    %v369 = vpop.f32.mrb[0].mxu0
    %v370 = vadd.f32 0.0, %v369
    %371 = vdwg.mxu0
    %v372 = vrot.slane %v368, 4
    %v373 = vadd.f32 %v368, %v372
    %v374 = vrot.slane %v373, 2
    %v375 = vadd.f32 %v373, %v374
    %v376 = vrot.slane %v375, 1
    %v377 = vadd.f32 %v375, %v376
    %v378 = vrot.slane %v370, 4
    %v379 = vadd.f32 %v370, %v378
    %v380 = vrot.slane %v379, 2
    %v381 = vadd.f32 %v379, %v380
    %v382 = vrot.slane %v381, 1
    %v383 = vadd.f32 %v381, %v382
    %v384 = vmul.f32 %v368, %v368
    %v385 = vmul.f32 %v370, %v370
    %v386 = vrot.slane %v384, 4
    %v387 = vadd.f32 %v384, %v386
    %v388 = vrot.slane %v387, 2
    %v389 = vadd.f32 %v387, %v388
    %v390 = vrot.slane %v389, 1
    %v391 = vadd.f32 %v389, %v390
    %v392 = vrot.slane %v385, 4
    %v393 = vadd.f32 %v385, %v392
    %v394 = vrot.slane %v393, 2
    %v395 = vadd.f32 %v393, %v394
    %v396 = vrot.slane %v395, 1
    %v397 = vadd.f32 %v395, %v396
    %v398 = vmul.f32 %v377, 0.125
    %v399 = vmul.f32 %v383, 0.125
    %v400 = vmul.f32 %v391, 0.125
    %v401 = vmul.f32 %v397, 0.125
    %v402 = vmul.f32 %v398, %v398
    %v403 = vmul.f32 %v399, %v399
    %v404 = vsub.f32 %v400, %v402
    %v405 = vsub.f32 %v401, %v403
    %v406 = vmax.f32 %v404, 0.0
    %v407 = vmax.f32 %v405, 0.0
    %v408 = vld [vmem:[%s5] sm:$0x3]
    %v409 = vld [vmem:[%s6] sm:$0x3]
    %v410 = vadd.f32 %v406, 1e-05
    %v411 = vadd.f32 %v407, 1e-05
    %v412 = vrsqrt.pop %v410
    %v413 = vrsqrt.pop %v411
    %v416 = vcombine.low %v412, %v413
    %v418 = vunpack.c.l.s4 1966171168
    %v419 = vunpack.c.0.s8 %v418
    %v420 = vlaneseq
    %v421 = vshrl.u32 %v420, 7
    %v422 = vsub.s32 %v419, %v421
    %v423 = vrot.slane %v416, %v422
    %v425 = vunpack.c.l.s4 1966171168
    %v426 = vunpack.c.0.s8 %v425
    %v427 = vlaneseq
    %v428 = vshrl.u32 %v427, 7
    %v429 = vsub.s32 %v426, %v428
    %v430 = vrot.slane %v423, %v429
    %v432 = vmul.f32 %v408, %v430
    %v434 = vlaneseq
    %v435 = vshrl.u32 %v434, 7
    %v436 = vsub.s32 0, %v435
    %v437 = vrot.slane %v432, %v436
    %v438 = vlaneseq
    %v439 = vshrl.u32 %v438, 7
    %v440 = vsub.s32 1, %v439
    %v441 = vrot.slane %v432, %v440
    %v444 = vmul.f32 %v398, %v437
    %v445 = vmul.f32 %v399, %v441
    %v448 = vcombine.low %v444, %v445
    %v450 = vunpack.c.l.s4 1966171168
    %v451 = vunpack.c.0.s8 %v450
    %v452 = vlaneseq
    %v453 = vshrl.u32 %v452, 7
    %v454 = vsub.s32 %v451, %v453
    %v455 = vrot.slane %v448, %v454
    %v457 = vunpack.c.l.s4 1966171168
    %v458 = vunpack.c.0.s8 %v457
    %v459 = vlaneseq
    %v460 = vshrl.u32 %v459, 7
    %v461 = vsub.s32 %v458, %v460
    %v462 = vrot.slane %v455, %v461
    %v464 = vsub.f32 %v409, %v462
    %v465 = vmul.f32 %v368, %v437
    %v466 = vmul.f32 %v370, %v441
    %v468 = vlaneseq
    %v469 = vshrl.u32 %v468, 7
    %v470 = vsub.s32 0, %v469
    %v471 = vrot.slane %v464, %v470
    %v472 = vlaneseq
    %v473 = vshrl.u32 %v472, 7
    %v474 = vsub.s32 1, %v473
    %v475 = vrot.slane %v464, %v474
    %v478 = vadd.f32 %v465, %v471
    %v479 = vadd.f32 %v466, %v475
    %v480 = vmax.f32 %v478, 0.0
    %v481 = vmax.f32 %v479, 0.0
    %v482 = vld [vmem:[%s7] sm:$0xff]
    %v483 = vld [vmem:[%s7 + $0x8] sm:$0xff]
    %v484 = vld [vmem:[%s7 + $0x10] sm:$0xff]
    %v485 = vld [vmem:[%s7 + $0x18] sm:$0xff]
    %v486 = vld [vmem:[%s7 + $0x20] sm:$0xff]
    %v487 = vld [vmem:[%s7 + $0x28] sm:$0xff]
    %v488 = vld [vmem:[%s7 + $0x30] sm:$0xff]
    %v489 = vld [vmem:[%s7 + $0x38] sm:$0xff]
    %v490 = vld [vmem:[%s7 + $0x40] sm:$0xff]
    %v491 = vld [vmem:[%s7 + $0x48] sm:$0xff]
    %v492 = vld [vmem:[%s7 + $0x50] sm:$0xff]
    %v493 = vld [vmem:[%s7 + $0x58] sm:$0xff]
    %v494 = vld [vmem:[%s7 + $0x60] sm:$0xff]
    %v495 = vld [vmem:[%s7 + $0x68] sm:$0xff]
    %v496 = vld [vmem:[%s7 + $0x70] sm:$0xff]
    %v497 = vld [vmem:[%s7 + $0x78] sm:$0xff]
    %v498 = vld [vmem:[%s7 + $0x80] sm:$0xff]
    %v499 = vld [vmem:[%s7 + $0x88] sm:$0xff]
    %v500 = vld [vmem:[%s7 + $0x90] sm:$0xff]
    %v501 = vld [vmem:[%s7 + $0x98] sm:$0xff]
    %v502 = vld [vmem:[%s7 + $0xa0] sm:$0xff]
    %v503 = vld [vmem:[%s7 + $0xa8] sm:$0xff]
    %v504 = vld [vmem:[%s7 + $0xb0] sm:$0xff]
    %v505 = vld [vmem:[%s7 + $0xb8] sm:$0xff]
    %v506 = vld [vmem:[%s7 + $0xc0] sm:$0xff]
    %v507 = vld [vmem:[%s7 + $0xc8] sm:$0xff]
    %v508 = vld [vmem:[%s7 + $0xd0] sm:$0xff]
    %v509 = vld [vmem:[%s7 + $0xd8] sm:$0xff]
    %v510 = vld [vmem:[%s7 + $0xe0] sm:$0xff]
    %v511 = vld [vmem:[%s7 + $0xe8] sm:$0xff]
    %v512 = vld [vmem:[%s7 + $0xf0] sm:$0xff]
    %v513 = vld [vmem:[%s7 + $0xf8] sm:$0xff]
    %v514 = vld [vmem:[%s8] sm:$0x1]
    %v516 = vlaneseq
    %v517 = vshrl.u32 %v516, 7
    %v518 = vsub.s32 0, %v517
    %v519 = vrot.slane %v514, %v518
    %521 = vmatprep.subr.mxu0 0.0
    %522 = vmatpush1.msra.mxu0 %v482
    %523 = vmatprep.subr.mxu0 0.0
    %524 = vmatpush1.msra.mxu0 %v483
    %525 = vmatprep.subr.mxu0 0.0
    %526 = vmatpush1.msra.mxu0 %v484
    %527 = vmatprep.subr.mxu0 0.0
    %528 = vmatpush1.msra.mxu0 %v485
    %529 = vmatprep.subr.mxu0 0.0
    %530 = vmatpush1.msra.mxu0 %v486
    %531 = vmatprep.subr.mxu0 0.0
    %532 = vmatpush1.msra.mxu0 %v487
    %533 = vmatprep.subr.mxu0 0.0
    %534 = vmatpush1.msra.mxu0 %v488
    %535 = vmatprep.subr.mxu0 0.0
    %536 = vmatpush1.msra.mxu0 %v489
    %537 = vmatprep.subr.mxu0 0.0
    %538 = vmatpush1.msra.mxu0 %v490
    %539 = vmatprep.subr.mxu0 0.0
    %540 = vmatpush1.msra.mxu0 %v491
    %541 = vmatprep.subr.mxu0 0.0
    %542 = vmatpush1.msra.mxu0 %v492
    %543 = vmatprep.subr.mxu0 0.0
    %544 = vmatpush1.msra.mxu0 %v493
    %545 = vmatprep.subr.mxu0 0.0
    %546 = vmatpush1.msra.mxu0 %v494
    %547 = vmatprep.subr.mxu0 0.0
    %548 = vmatpush1.msra.mxu0 %v495
    %549 = vmatprep.subr.mxu0 0.0
    %550 = vmatpush1.msra.mxu0 %v496
    %551 = vmatprep.subr.mxu0 0.0
    %552 = vmatpush1.msra.mxu0 %v497
    %553 = vmatprep.subr.mxu0 0.0
    %554 = vmatpush1.msra.mxu0 %v498
    %555 = vmatprep.subr.mxu0 0.0
    %556 = vmatpush1.msra.mxu0 %v499
    %557 = vmatprep.subr.mxu0 0.0
    %558 = vmatpush1.msra.mxu0 %v500
    %559 = vmatprep.subr.mxu0 0.0
    %560 = vmatpush1.msra.mxu0 %v501
    %561 = vmatprep.subr.mxu0 0.0
    %562 = vmatpush1.msra.mxu0 %v502
    %563 = vmatprep.subr.mxu0 0.0
    %564 = vmatpush1.msra.mxu0 %v503
    %565 = vmatprep.subr.mxu0 0.0
    %566 = vmatpush1.msra.mxu0 %v504
    %567 = vmatprep.subr.mxu0 0.0
    %568 = vmatpush1.msra.mxu0 %v505
    %569 = vmatprep.subr.mxu0 0.0
    %570 = vmatpush1.msra.mxu0 %v506
    %571 = vmatprep.subr.mxu0 0.0
    %572 = vmatpush1.msra.mxu0 %v507
    %573 = vmatprep.subr.mxu0 0.0
    %574 = vmatpush1.msra.mxu0 %v508
    %575 = vmatprep.subr.mxu0 0.0
    %576 = vmatpush1.msra.mxu0 %v509
    %577 = vmatprep.subr.mxu0 0.0
    %578 = vmatpush1.msra.mxu0 %v510
    %579 = vmatprep.subr.mxu0 0.0
    %580 = vmatpush1.msra.mxu0 %v511
    %581 = vmatprep.subr.mxu0 0.0
    %582 = vmatpush1.msra.mxu0 %v512
    %583 = vmatprep.subr.mxu0 0.0
    %584 = vmatpush1.msra.mxu0 %v513
    %585 = vmatprep.mubr.f32.mxu0 %v481
    %586 = vmatmul.mubr.f32.gmra.mrb[0].mxu0 %v480
    %v587 = vpop.f32.mrb[0].mxu0
    %v588 = vadd.f32 %v519, %v587
    %v589 = vpop.f32.mrb[0].mxu0
    %590 = vdwg.mxu0
    %v591 = vtanh.pop %v588
    %v592 = vmul.f32 %v591, 2.0
    %593 = vst.msk [vmem:[#allocation5] sm:$0xff] %vm52, %v592
    // Predicated region
    $region42: #{tpu_custom_call.1} parent=1 // pred_check
      _
    $region43: #{tpu_custom_call.1} parent=1 // pred_check_branch
      %595 = sbr.rel (0) target = $region45
    $region44: #{tpu_custom_call.1} parent=1 // pred_region
      %s597 = ssub.s32 128, 128
      %598 = vsyncadd [#allocation4], %s597
      %s600 = sshll.u32 [#allocation5], 4
      %s601 = int_to_ptr.vmem [resolvable:$true] %s600
      %603 = dma.vmem_to_hbm [thread:$0]  %s601, 128, %s9, [#allocation4]
    $region45: #{tpu_custom_call.1} parent=1 // pred_fallthru
      _
    // Predicated region
    $region46: #{tpu_custom_call.1} parent=1 // pred_check
      _
    $region47: #{tpu_custom_call.1} parent=1 // pred_check_branch
      %605 = sbr.rel (0) target = $region49
    $region48: #{tpu_custom_call.1} parent=1 // pred_region
      %606 = dma.done [#allocation4], 128
    $region49: #{tpu_custom_call.1} parent=1 // pred_fallthru
      _
    %607 = vsyncpa [#allocation3], 1
    %608 = vsyncpa [#allocation4], 1

</llo_original>
